<compile_context>
chip_gen: v6e
topology: v6e:2x2x1
jax: 0.10.0
libtpu: 0.0.40
codegen_flags: <defaults>
</compile_context>

<pallas_src>
import numpy as np
import jax
import jax.numpy as jnp
from jax import lax
from jax.experimental import pallas as pl
from jax.experimental.pallas import tpu as pltpu

# Finite "masked out" logit: exp underflows to exactly 0 in f32, representable
# in bf16, and keeps the online-rescale garbage terms finite (no inf/nan).
NEG_BIG = -1e9


def _kld_kernel(labels_ref, pclass_ref, pair_ref, dist_ref, out_ref,
                m_sc, s_sc, cnt_sc, acc_sc):
    # labels_ref: (1, TN) int32   target labels for this pixel tile (already -1 shifted)
    # pclass_ref: (P, 1)  int32   class id of each prototype (-2 => unassigned)
    # pair_ref:   (P, P)  f32     static pair validity (same class, same scale, j<k)
    # dist_ref:   (P, TN) native  prototype distances for this (image, tile)
    # out_ref:    (1, 2)  f32     per-image [sum exp(-kld), pair count]
    # scratch: m_sc/s_sc/cnt_sc (P,1) f32, acc_sc (P,P) f32  (online-softmax state)
    t = pl.program_id(1)

    @pl.when(t == 0)
    def _():
        m_sc[...] = jnp.full_like(m_sc, NEG_BIG)
        s_sc[...] = jnp.zeros_like(s_sc)
        cnt_sc[...] = jnp.zeros_like(cnt_sc)
        acc_sc[...] = jnp.zeros_like(acc_sc)

    lab = labels_ref[...]                        # (1, TN) int32
    pc = pclass_ref[...]                         # (P, 1)  int32
    d = dist_ref[...].astype(jnp.float32)        # (P, TN), cast in-kernel (native DMA width)

    eq = lab == pc                               # (P, TN) per-prototype pixel mask
    z = jnp.where(eq, d, NEG_BIG)
    ml = jnp.max(z, axis=1, keepdims=True)       # (P, 1) tile max

    m_old = m_sc[...]
    m_new = jnp.maximum(m_old, ml)
    alpha = jnp.exp(m_old - m_new)               # (P, 1) rescale for old stats
    delta_row = jnp.transpose(m_new - m_old)     # (1, P) column shift for accumulator

    zc = z - m_new                               # (P, TN), <= 0, anchored at 0
    e = jnp.exp(zc)                              # exactly 0 on masked lanes once a real max exists

    s_resc = alpha * s_sc[...]                   # (P, 1)
    # Re-base old accumulator to the new per-row scale and new per-column max:
    #   A'[j,k] = alpha_j * A[j,k] - delta_k * (alpha_j * s_old_j)
    acc_resc = alpha * acc_sc[...] - s_resc * delta_row

    # Tile contribution A_t[j,k] = sum_n e_j * zc_k — single K=TN MXU contraction,
    # bf16 operands, f32 accumulation.  (lg is never materialised; the -log(s_k)
    # of the log-softmax cancels in the symmetric KL, see epilogue.)
    dn = (((1,), (1,)), ((), ()))
    a_tile = lax.dot_general(e.astype(jnp.bfloat16), zc.astype(jnp.bfloat16), dn,
                             preferred_element_type=jnp.float32)      # (P, P)

    acc_sc[...] = acc_resc + a_tile
    s_sc[...] = s_resc + jnp.sum(e, axis=1, keepdims=True)
    cnt_sc[...] = cnt_sc[...] + jnp.sum(eq.astype(jnp.float32), axis=1, keepdims=True)
    m_sc[...] = m_new

    @pl.when(t == pl.num_programs(1) - 1)
    def _():
        acc = acc_sc[...]                        # A[j,k] = sum_n e_j * zc_k
        inv_s = pl.reciprocal(s_sc[...])         # (P, 1), s >= 1 always
        npro = acc.shape[0]
        rows = lax.broadcasted_iota(jnp.int32, (npro, npro), 0)
        cols = lax.broadcasted_iota(jnp.int32, (npro, npro), 1)
        diag_col = jnp.sum(jnp.where(rows == cols, acc, 0.0),
                           axis=1, keepdims=True)                     # (P, 1)  A[j,j]

        # KL(q_j || q_k) = (A[j,j]-A[j,k])/s_j - log s_j + log s_k; the log terms
        # cancel in the symmetric KL, so they are never computed:
        #   kld[j,k] = 0.5*(R[j,k] + R[k,j]),  R[j,k] = (A[j,j]-A[j,k])/s_j.
        r = (diag_col - acc) * inv_s                                  # (P, P), diag == 0
        kld = 0.5 * (r + jnp.transpose(r))                            # XLU transpose, no matmul

        # Need >= 2 masked pixels.  Same-class pairs share the pixel mask, so a row
        # gate suffices; `valid` also discards cnt==0 rows and the cross-class
        # garbage entries of A — do not remove this guard.
        ok = (cnt_sc[...] >= 2.0).astype(jnp.float32)                 # (P, 1)
        valid = pair_ref[...] * ok                                    # (P, P)
        vals = jnp.where(valid > 0.5, jnp.exp(-kld), 0.0)

        lane = lax.broadcasted_iota(jnp.int32, (1, 2), 1)
        out_ref[...] = jnp.where(lane == 0, jnp.sum(vals), jnp.sum(valid))


def _round_up(x, m):
    return (x + m - 1) // m * m


def kld_loss_pallas(prototype_distances, target_labels, prototype_class_identity,
                    num_scales, scale_num_prototypes, *, pixel_tile_cap=16384):
    B, P, H, W = prototype_distances.shape
    N = H * W

    # Kernel layout: pixels N = H*W on lanes, prototypes P on sublanes.  Keep the
    # native distance dtype (bf16 inputs stream at half DMA width); cast in-kernel.
    dist = prototype_distances.reshape(B, P, N)
    labels = (target_labels.reshape(B, N).astype(jnp.int32) - 1).reshape(B, 1, N)

    # Pixel-axis tiling (online masked softmax inside the kernel) so the VMEM
    # footprint is independent of the image size.
    n_pad = _round_up(N, 128)
    tn = min(pixel_tile_cap, n_pad)
    n_pad = _round_up(n_pad, tn)
    nt = n_pad // tn
    if n_pad != N:
        # Padded pixels get label -100, which never matches any prototype class.
        labels = jnp.pad(labels, ((0, 0), (0, 0), (0, n_pad - N)), constant_values=-100)
        dist = jnp.pad(dist, ((0, 0), (0, 0), (0, n_pad - N)))

    pci = np.asarray(prototype_class_identity)
    proto_class = np.argmax(pci, axis=1).astype(np.int32)
    proto_class = np.where(pci.sum(axis=1) > 0, proto_class, -2).astype(np.int32)
    proto_scale = np.zeros((P,), np.int32)
    for s in range(num_scales):
        lo, hi = scale_num_prototypes[s]
        proto_scale[lo:hi] = s
    jj, kk = np.meshgrid(np.arange(P), np.arange(P), indexing="ij")
    pair_static = ((proto_class[jj] == proto_class[kk])
                   & (proto_scale[jj] == proto_scale[kk])
                   & (jj < kk) & (proto_class[jj] >= 0)).astype(np.float32)

    pclass = jnp.asarray(proto_class).reshape(P, 1)
    pair = jnp.asarray(pair_static)

    # VMEM budget: double-buffered (P,TN) dist + (1,TN) label blocks, a handful of
    # (P,TN) f32 temporaries (eq/z/zc/e), bf16 matmul operands, tiny (P,P)/(P,1)
    # slabs + scratch.  1.5x headroom, clamped to [16 MiB, 40 MiB] so it is safe on
    # v7x (64 MiB physical per core) as well as v5e/v6e (128 MiB).
    elem = jnp.dtype(dist.dtype).itemsize
    est = (2 * P * tn * elem          # double-buffered dist blocks
           + 2 * tn * 4               # double-buffered label blocks
           + 6 * P * tn * 4           # f32 temporaries in the body
           + 2 * P * tn * 2           # bf16 matmul operands
           + 16 * P * P * 4 + 16 * P * 4)
    vmem_limit = int(min(max(int(1.5 * est), 16 * 2**20), 40 * 2**20))

    out = pl.pallas_call(
        _kld_kernel,
        out_shape=jax.ShapeDtypeStruct((B, 1, 2), jnp.float32),
        grid_spec=pltpu.PrefetchScalarGridSpec(
            num_scalar_prefetch=0,
            grid=(B, nt),
            in_specs=[
                pl.BlockSpec((pl.Squeezed(), 1, tn), lambda b, t: (b, 0, t)),   # labels
                pl.BlockSpec((P, 1), lambda b, t: (0, 0)),                      # proto class ids
                pl.BlockSpec((P, P), lambda b, t: (0, 0)),                      # static pair mask
                pl.BlockSpec((pl.Squeezed(), P, tn), lambda b, t: (b, 0, t)),   # distances
            ],
            out_specs=pl.BlockSpec((pl.Squeezed(), 1, 2), lambda b, t: (b, 0, 0)),
            scratch_shapes=[
                pltpu.VMEM((P, 1), jnp.float32),   # running max  m_j
                pltpu.VMEM((P, 1), jnp.float32),   # running sum  s_j
                pltpu.VMEM((P, 1), jnp.float32),   # pixel count  cnt_j
                pltpu.VMEM((P, P), jnp.float32),   # accumulator  A[j,k]
            ],
        ),
        compiler_params=pltpu.CompilerParams(
            dimension_semantics=("parallel", "arbitrary"),
            vmem_limit_bytes=vmem_limit,
        ),
    )(labels, pclass, pair, dist)

    s = jnp.sum(out[:, 0, 0])
    c = jnp.sum(out[:, 0, 1])
    return jnp.where(c > 0, s / jnp.maximum(c, 1.0), jnp.float32(0.0))


def kld_loss_ref(prototype_distances, target_labels, prototype_class_identity,
                 num_scales, scale_num_prototypes):
    """Pure-numpy faithful port of the PyTorch forward (for verification)."""
    pd = np.asarray(prototype_distances, dtype=np.float64)
    tl = np.asarray(target_labels)
    pci = np.asarray(prototype_class_identity)
    B, P, H, W = pd.shape
    labels = tl.reshape(B, -1) - 1
    dist = np.transpose(pd, (0, 2, 3, 1)).reshape(B, -1, P)
    klds = []
    for b in range(B):
        for c in np.unique(labels[b]):
            if c < 0 or c >= pci.shape[1]:
                continue
            cls_protos = np.nonzero(pci[:, c])[0]
            if len(cls_protos) == 0:
                continue
            mask = labels[b] == c
            for s in range(num_scales):
                lo, hi = scale_num_prototypes[s]
                protos_s = [p for p in cls_protos if lo <= p < hi]
                acts = [dist[b, :, p][mask] for p in protos_s]
                log_acts = [a - (a.max() + np.log(np.sum(np.exp(a - a.max())))) for a in acts]
                if len(protos_s) < 2:
                    continue
                for j in range(len(protos_s)):
                    if len(log_acts[j]) < 2:
                        continue
                    for k in range(j + 1, len(protos_s)):
                        if len(log_acts[k]) < 2:
                            continue
                        lp1, lp2 = log_acts[j], log_acts[k]
                        kld1 = np.sum(np.exp(lp2) * (lp2 - lp1))
                        kld2 = np.sum(np.exp(lp1) * (lp1 - lp2))
                        klds.append(0.5 * (kld1 + kld2))
    if klds:
        return float(np.mean(np.exp(-np.asarray(klds))))
    return 0.0


if __name__ == "__main__":
    key = jax.random.PRNGKey(0)
    B, H, W = 2, 16, 16
    num_classes, num_scales = 4, 2
    protos_per_class_per_scale = 2
    P = num_classes * num_scales * protos_per_class_per_scale  # 16 (multiple of 8 sublanes)

    # deterministic synthetic module parameters (shapes from __init__)
    pci = np.zeros((P, num_classes), np.float32)
    proto_classes = []
    for s in range(num_scales):
        for c in range(num_classes):
            for _ in range(protos_per_class_per_scale):
                proto_classes.append(c)
    proto_classes = np.asarray(proto_classes)
    pci[np.arange(P), proto_classes] = 1.0
    per_scale = num_classes * protos_per_class_per_scale
    scale_num_prototypes = {s: (s * per_scale, (s + 1) * per_scale) for s in range(num_scales)}

    k1, k2 = jax.random.split(key)
    prototype_distances = jax.random.normal(k1, (B, P, H, W), dtype=jnp.float32)
    target_labels = jax.random.randint(k2, (B, H, W), 0, num_classes + 1, dtype=jnp.int32)

    loss = kld_loss_pallas(prototype_distances, target_labels, pci,
                           num_scales, scale_num_prototypes)
    loss = jax.block_until_ready(loss)

    ref = kld_loss_ref(np.asarray(prototype_distances), np.asarray(target_labels),
                       pci, num_scales, scale_num_prototypes)
    # bf16 MXU operands dominate the tolerance (~0.5% on exp(-kld)); casting the
    # contraction operands to f32 in the kernel recovers ~1e-4 agreement.
    np.testing.assert_allclose(float(loss), ref, rtol=2e-2, atol=2e-3)
    print("KERNEL_OK")
</pallas_src>

<mosaic_0001>
module attributes {stable_mosaic.version = 11 : i64} {
  func.func @_kld_kernel(%arg0: i32, %arg1: i32, %arg2: memref<1x1x256xi32, #tpu.memory_space<vmem>>, %arg3: memref<16x1xi32, #tpu.memory_space<vmem>>, %arg4: memref<16x16xf32, #tpu.memory_space<vmem>>, %arg5: memref<1x16x256xf32, #tpu.memory_space<vmem>>, %arg6: memref<1x1x2xf32, #tpu.memory_space<vmem>>, %arg7: memref<16x1xf32, #tpu.memory_space<vmem>>, %arg8: memref<16x1xf32, #tpu.memory_space<vmem>>, %arg9: memref<16x1xf32, #tpu.memory_space<vmem>>, %arg10: memref<16x16xf32, #tpu.memory_space<vmem>>) attributes {dimension_semantics = [#tpu.dimension_semantics<parallel>, #tpu.dimension_semantics<arbitrary>], iteration_bounds = array<i64: 2, 1>, scalar_prefetch = 0 : i64, scratch_operands = 4 : i64, tpu.core_type = #tpu.core_type<tc>, window_params = [{transform_indices = @transform_0, window_bounds = array<i64: 1, 1, 256>}, {pipeline_mode = #tpu.pipeline_mode<synchronous>, transform_indices = @transform_1, window_bounds = array<i64: 16, 1>}, {pipeline_mode = #tpu.pipeline_mode<synchronous>, transform_indices = @transform_2, window_bounds = array<i64: 16, 16>}, {transform_indices = @transform_3, window_bounds = array<i64: 1, 16, 256>}, {transform_indices = @transform_4, window_bounds = array<i64: 1, 1, 2>}]} {
    %c0_i32 = arith.constant 0 : i32
    %0 = arith.cmpi eq, %arg1, %c0_i32 : i32
    %1 = arith.extui %0 : i1 to i32
    %c0_i32_0 = arith.constant 0 : i32
    %2 = arith.cmpi ne, %1, %c0_i32_0 : i32
    scf.if %2 {
      %cst_30 = arith.constant -1.000000e+09 : f32
      %53 = vector.broadcast %cst_30 : f32 to vector<16x1xf32>
      %c0_31 = arith.constant 0 : index
      %c0_32 = arith.constant 0 : index
      %54 = vector.load %arg7[%c0_31, %c0_32] : memref<16x1xf32, #tpu.memory_space<vmem>>, vector<16x1xf32>
      tpu.vector_store %arg7[%c0_31, %c0_32], %53 {strides = array<i32>} : memref<16x1xf32, #tpu.memory_space<vmem>>, vector<16x1xf32>,
      %cst_33 = arith.constant 0.000000e+00 : f32
      %55 = vector.broadcast %cst_33 : f32 to vector<16x1xf32>
      %c0_34 = arith.constant 0 : index
      %c0_35 = arith.constant 0 : index
      %56 = vector.load %arg8[%c0_34, %c0_35] : memref<16x1xf32, #tpu.memory_space<vmem>>, vector<16x1xf32>
      tpu.vector_store %arg8[%c0_34, %c0_35], %55 {strides = array<i32>} : memref<16x1xf32, #tpu.memory_space<vmem>>, vector<16x1xf32>,
      %cst_36 = arith.constant 0.000000e+00 : f32
      %57 = vector.broadcast %cst_36 : f32 to vector<16x1xf32>
      %c0_37 = arith.constant 0 : index
      %c0_38 = arith.constant 0 : index
      %58 = vector.load %arg9[%c0_37, %c0_38] : memref<16x1xf32, #tpu.memory_space<vmem>>, vector<16x1xf32>
      tpu.vector_store %arg9[%c0_37, %c0_38], %57 {strides = array<i32>} : memref<16x1xf32, #tpu.memory_space<vmem>>, vector<16x1xf32>,
      %cst_39 = arith.constant 0.000000e+00 : f32
      %59 = vector.broadcast %cst_39 : f32 to vector<16x16xf32>
      %c0_40 = arith.constant 0 : index
      %c0_41 = arith.constant 0 : index
      %60 = vector.load %arg10[%c0_40, %c0_41] : memref<16x16xf32, #tpu.memory_space<vmem>>, vector<16x16xf32>
      tpu.vector_store %arg10[%c0_40, %c0_41], %59 {strides = array<i32>} : memref<16x16xf32, #tpu.memory_space<vmem>>, vector<16x16xf32>,
    } else {
    }
    %c0 = arith.constant 0 : index
    %c0_1 = arith.constant 0 : index
    %c0_2 = arith.constant 0 : index
    %3 = vector.load %arg2[%c0, %c0_1, %c0_2] : memref<1x1x256xi32, #tpu.memory_space<vmem>>, vector<1x1x256xi32>
    %4 = vector.shape_cast %3 : vector<1x1x256xi32> to vector<1x256xi32>
    %c0_3 = arith.constant 0 : index
    %c0_4 = arith.constant 0 : index
    %5 = vector.load %arg3[%c0_3, %c0_4] : memref<16x1xi32, #tpu.memory_space<vmem>>, vector<16x1xi32>
    %c0_5 = arith.constant 0 : index
    %c0_6 = arith.constant 0 : index
    %c0_7 = arith.constant 0 : index
    %6 = vector.load %arg5[%c0_5, %c0_6, %c0_7] : memref<1x16x256xf32, #tpu.memory_space<vmem>>, vector<1x16x256xf32>
    %7 = vector.shape_cast %6 : vector<1x16x256xf32> to vector<16x256xf32>
    %8 = vector.broadcast %4 : vector<1x256xi32> to vector<16x256xi32>
    %9 = vector.broadcast %5 : vector<16x1xi32> to vector<16x256xi32>
    %10 = arith.cmpi eq, %8, %9 : vector<16x256xi32>
    %cst = arith.constant -1.000000e+09 : f32
    %11 = vector.broadcast %cst : f32 to vector<16x256xf32>
    %12 = arith.select %10, %7, %11 : vector<16x256xi1>, vector<16x256xf32>
    %cst_8 = arith.constant dense<0xFF800000> : vector<16xf32>
    %13 = vector.multi_reduction <maximumf>, %12, %cst_8 [1] : vector<16x256xf32> to vector<16xf32>
    %14 = vector.shape_cast %13 : vector<16xf32> to vector<16x1xf32>
    %c0_9 = arith.constant 0 : index
    %c0_10 = arith.constant 0 : index
    %15 = vector.load %arg7[%c0_9, %c0_10] : memref<16x1xf32, #tpu.memory_space<vmem>>, vector<16x1xf32>
    %16 = arith.maximumf %15, %14 : vector<16x1xf32>
    %17 = arith.subf %15, %16 : vector<16x1xf32>
    %18 = math.exp %17 : vector<16x1xf32>
    %19 = arith.subf %16, %15 : vector<16x1xf32>
    %20 = tpu.transpose %19, [1, 0] : vector<16x1xf32> -> vector<1x16xf32>
    %21 = vector.broadcast %16 : vector<16x1xf32> to vector<16x256xf32>
    %22 = arith.subf %12, %21 : vector<16x256xf32>
    %23 = math.exp %22 : vector<16x256xf32>
    %c0_11 = arith.constant 0 : index
    %c0_12 = arith.constant 0 : index
    %24 = vector.load %arg8[%c0_11, %c0_12] : memref<16x1xf32, #tpu.memory_space<vmem>>, vector<16x1xf32>
    %25 = arith.mulf %18, %24 : vector<16x1xf32>
    %c0_13 = arith.constant 0 : index
    %c0_14 = arith.constant 0 : index
    %26 = vector.load %arg10[%c0_13, %c0_14] : memref<16x16xf32, #tpu.memory_space<vmem>>, vector<16x16xf32>
    %27 = vector.broadcast %18 : vector<16x1xf32> to vector<16x16xf32>
    %28 = arith.mulf %27, %26 : vector<16x16xf32>
    %29 = vector.broadcast %25 : vector<16x1xf32> to vector<16x16xf32>
    %30 = vector.broadcast %20 : vector<1x16xf32> to vector<16x16xf32>
    %31 = arith.mulf %29, %30 : vector<16x16xf32>
    %32 = arith.subf %28, %31 : vector<16x16xf32>
    %33 = arith.truncf %23 : vector<16x256xf32> to vector<16x256xbf16>
    %34 = arith.truncf %22 : vector<16x256xf32> to vector<16x256xbf16>
    %cst_15 = arith.constant dense<0.000000e+00> : vector<16x16xf32>
    %35 = tpu.matmul %33, %34, %cst_15 {dimension_numbers = #tpu.dot_dimension_numbers<[1], [1], [0], [0], [0, 0, 1, 0], [], []>} : vector<16x256xbf16>, vector<16x256xbf16>, vector<16x16xf32> -> vector<16x16xf32>
    %36 = arith.addf %32, %35 : vector<16x16xf32>
    %c0_16 = arith.constant 0 : index
    %c0_17 = arith.constant 0 : index
    %37 = vector.load %arg10[%c0_16, %c0_17] : memref<16x16xf32, #tpu.memory_space<vmem>>, vector<16x16xf32>
    tpu.vector_store %arg10[%c0_16, %c0_17], %36 {strides = array<i32>} : memref<16x16xf32, #tpu.memory_space<vmem>>, vector<16x16xf32>,
    %cst_18 = arith.constant dense<0.000000e+00> : vector<16xf32>
    %38 = vector.multi_reduction <add>, %23, %cst_18 [1] : vector<16x256xf32> to vector<16xf32>
    %39 = vector.shape_cast %38 : vector<16xf32> to vector<16x1xf32>
    %40 = arith.addf %25, %39 : vector<16x1xf32>
    %c0_19 = arith.constant 0 : index
    %c0_20 = arith.constant 0 : index
    %41 = vector.load %arg8[%c0_19, %c0_20] : memref<16x1xf32, #tpu.memory_space<vmem>>, vector<16x1xf32>
    tpu.vector_store %arg8[%c0_19, %c0_20], %40 {strides = array<i32>} : memref<16x1xf32, #tpu.memory_space<vmem>>, vector<16x1xf32>,
    %c0_21 = arith.constant 0 : index
    %c0_22 = arith.constant 0 : index
    %42 = vector.load %arg9[%c0_21, %c0_22] : memref<16x1xf32, #tpu.memory_space<vmem>>, vector<16x1xf32>
    %43 = arith.extui %10 : vector<16x256xi1> to vector<16x256xi32>
    %44 = arith.sitofp %43 : vector<16x256xi32> to vector<16x256xf32>
    %cst_23 = arith.constant dense<0.000000e+00> : vector<16xf32>
    %45 = vector.multi_reduction <add>, %44, %cst_23 [1] : vector<16x256xf32> to vector<16xf32>
    %46 = vector.shape_cast %45 : vector<16xf32> to vector<16x1xf32>
    %47 = arith.addf %42, %46 : vector<16x1xf32>
    %c0_24 = arith.constant 0 : index
    %c0_25 = arith.constant 0 : index
    %48 = vector.load %arg9[%c0_24, %c0_25] : memref<16x1xf32, #tpu.memory_space<vmem>>, vector<16x1xf32>
    tpu.vector_store %arg9[%c0_24, %c0_25], %47 {strides = array<i32>} : memref<16x1xf32, #tpu.memory_space<vmem>>, vector<16x1xf32>,
    %c0_26 = arith.constant 0 : index
    %c0_27 = arith.constant 0 : index
    %49 = vector.load %arg7[%c0_26, %c0_27] : memref<16x1xf32, #tpu.memory_space<vmem>>, vector<16x1xf32>
    tpu.vector_store %arg7[%c0_26, %c0_27], %16 {strides = array<i32>} : memref<16x1xf32, #tpu.memory_space<vmem>>, vector<16x1xf32>,
    %c0_i32_28 = arith.constant 0 : i32
    %50 = arith.cmpi eq, %arg1, %c0_i32_28 : i32
    %51 = arith.extui %50 : i1 to i32
    %c0_i32_29 = arith.constant 0 : i32
    %52 = arith.cmpi ne, %51, %c0_i32_29 : i32
    scf.if %52 {
      %c0_30 = arith.constant 0 : index
      %c0_31 = arith.constant 0 : index
      %53 = vector.load %arg10[%c0_30, %c0_31] : memref<16x16xf32, #tpu.memory_space<vmem>>, vector<16x16xf32>
      %c0_32 = arith.constant 0 : index
      %c0_33 = arith.constant 0 : index
      %54 = vector.load %arg8[%c0_32, %c0_33] : memref<16x1xf32, #tpu.memory_space<vmem>>, vector<16x1xf32>
      %55 = tpu.reciprocal %54 : vector<16x1xf32> -> vector<16x1xf32>
      %56 = tpu.iota {dimensions = array<i32: 0>} : vector<16x16xi32>
      %57 = tpu.iota {dimensions = array<i32: 1>} : vector<16x16xi32>
      %58 = arith.cmpi eq, %56, %57 : vector<16x16xi32>
      %cst_34 = arith.constant 0.000000e+00 : f32
      %59 = vector.broadcast %cst_34 : f32 to vector<16x16xf32>
      %60 = arith.select %58, %53, %59 : vector<16x16xi1>, vector<16x16xf32>
      %cst_35 = arith.constant dense<0.000000e+00> : vector<16xf32>
      %61 = vector.multi_reduction <add>, %60, %cst_35 [1] : vector<16x16xf32> to vector<16xf32>
      %62 = vector.shape_cast %61 : vector<16xf32> to vector<16x1xf32>
      %63 = vector.broadcast %62 : vector<16x1xf32> to vector<16x16xf32>
      %64 = arith.subf %63, %53 : vector<16x16xf32>
      %65 = vector.broadcast %55 : vector<16x1xf32> to vector<16x16xf32>
      %66 = arith.mulf %64, %65 : vector<16x16xf32>
      %67 = tpu.transpose %66, [1, 0] : vector<16x16xf32> -> vector<16x16xf32>
      %68 = arith.addf %66, %67 : vector<16x16xf32>
      %cst_36 = arith.constant 5.000000e-01 : f32
      %69 = vector.broadcast %cst_36 : f32 to vector<16x16xf32>
      %70 = arith.mulf %69, %68 : vector<16x16xf32>
      %c0_37 = arith.constant 0 : index
      %c0_38 = arith.constant 0 : index
      %71 = vector.load %arg9[%c0_37, %c0_38] : memref<16x1xf32, #tpu.memory_space<vmem>>, vector<16x1xf32>
      %cst_39 = arith.constant 2.000000e+00 : f32
      %72 = vector.broadcast %cst_39 : f32 to vector<16x1xf32>
      %73 = arith.cmpf oge, %71, %72 : vector<16x1xf32>
      %74 = arith.extui %73 : vector<16x1xi1> to vector<16x1xi32>
      %75 = arith.sitofp %74 : vector<16x1xi32> to vector<16x1xf32>
      %c0_40 = arith.constant 0 : index
      %c0_41 = arith.constant 0 : index
      %76 = vector.load %arg4[%c0_40, %c0_41] : memref<16x16xf32, #tpu.memory_space<vmem>>, vector<16x16xf32>
      %77 = vector.broadcast %75 : vector<16x1xf32> to vector<16x16xf32>
      %78 = arith.mulf %76, %77 : vector<16x16xf32>
      %cst_42 = arith.constant 5.000000e-01 : f32
      %79 = vector.broadcast %cst_42 : f32 to vector<16x16xf32>
      %80 = arith.cmpf ogt, %78, %79 : vector<16x16xf32>
      %cst_43 = arith.constant 0.000000e+00 : f32
      %81 = vector.broadcast %cst_43 : f32 to vector<16x16xf32>
      %82 = arith.subf %81, %70 : vector<16x16xf32>
      %83 = math.exp %82 : vector<16x16xf32>
      %cst_44 = arith.constant 0.000000e+00 : f32
      %84 = vector.broadcast %cst_44 : f32 to vector<16x16xf32>
      %85 = arith.select %80, %83, %84 : vector<16x16xi1>, vector<16x16xf32>
      %86 = tpu.iota {dimensions = array<i32: 1>} : vector<1x2xi32>
      %c0_i32_45 = arith.constant 0 : i32
      %87 = vector.broadcast %c0_i32_45 : i32 to vector<1x2xi32>
      %88 = arith.cmpi eq, %86, %87 : vector<1x2xi32>
      %89 = vector.shape_cast %85 : vector<16x16xf32> to vector<1x16x16xf32>
      %cst_46 = arith.constant dense<0.000000e+00> : vector<1xf32>
      %90 = vector.multi_reduction <add>, %89, %cst_46 [1, 2] : vector<1x16x16xf32> to vector<1xf32>
      %91 = vector.shape_cast %90 : vector<1xf32> to vector<1x1x1xf32>
      %92 = vector.extract %91[0, 0, 0] : f32 from vector<1x1x1xf32>
      %93 = vector.shape_cast %78 : vector<16x16xf32> to vector<1x16x16xf32>
      %cst_47 = arith.constant dense<0.000000e+00> : vector<1xf32>
      %94 = vector.multi_reduction <add>, %93, %cst_47 [1, 2] : vector<1x16x16xf32> to vector<1xf32>
      %95 = vector.shape_cast %94 : vector<1xf32> to vector<1x1x1xf32>
      %96 = vector.extract %95[0, 0, 0] : f32 from vector<1x1x1xf32>
      %97 = vector.broadcast %92 : f32 to vector<1x2xf32>
      %98 = vector.broadcast %96 : f32 to vector<1x2xf32>
      %99 = arith.select %88, %97, %98 : vector<1x2xi1>, vector<1x2xf32>
      %c0_48 = arith.constant 0 : index
      %c0_49 = arith.constant 0 : index
      %c0_50 = arith.constant 0 : index
      %100 = vector.load %arg6[%c0_48, %c0_49, %c0_50] : memref<1x1x2xf32, #tpu.memory_space<vmem>>, vector<1x1x2xf32>
      %101 = vector.shape_cast %100 : vector<1x1x2xf32> to vector<1x2xf32>
      %102 = vector.shape_cast %99 : vector<1x2xf32> to vector<1x1x2xf32>
      tpu.vector_store %arg6[%c0_48, %c0_49, %c0_50], %102 {strides = array<i32>} : memref<1x1x2xf32, #tpu.memory_space<vmem>>, vector<1x1x2xf32>,
    } else {
    }
    return
  }
  func.func @transform_0(%arg0: i32, %arg1: i32) -> (i32, i32, i32) {
    %c0_i32 = arith.constant 0 : i32
    %c0_i32_0 = arith.constant 0 : i32
    return %arg0, %c0_i32, %arg1 : i32, i32, i32
  }
  func.func @transform_1(%arg0: i32, %arg1: i32) -> (i32, i32) {
    %c0_i32 = arith.constant 0 : i32
    %c0_i32_0 = arith.constant 0 : i32
    %c0_i32_1 = arith.constant 0 : i32
    return %c0_i32, %c0_i32_0 : i32, i32
  }
  func.func @transform_2(%arg0: i32, %arg1: i32) -> (i32, i32) {
    %c0_i32 = arith.constant 0 : i32
    %c0_i32_0 = arith.constant 0 : i32
    %c0_i32_1 = arith.constant 0 : i32
    return %c0_i32, %c0_i32_0 : i32, i32
  }
  func.func @transform_3(%arg0: i32, %arg1: i32) -> (i32, i32, i32) {
    %c0_i32 = arith.constant 0 : i32
    %c0_i32_0 = arith.constant 0 : i32
    return %arg0, %c0_i32, %arg1 : i32, i32, i32
  }
  func.func @transform_4(%arg0: i32, %arg1: i32) -> (i32, i32, i32) {
    %c0_i32 = arith.constant 0 : i32
    %c0_i32_0 = arith.constant 0 : i32
    %c0_i32_1 = arith.constant 0 : i32
    return %arg0, %c0_i32, %c0_i32_0 : i32, i32, i32
  }
}

</mosaic_0001>

<llo_original>
// kernel: tpu_custom_call.1
$region0: #{tpu_custom_call.1}
  #allocation0 [shape = 'u32[]', space=smem, size = 0x4, offset = 0x4, fixed_abs, tag = 'smem constant byte address 0x4 - core index']
  #allocation1 [shape = 'u32[144,128]{1,0:T(1,128)}', space=vmem, size = 0x12000, scoped, tag = 'internal scratch']
  #allocation2 [shape = 'f32[16,1]{1,0:T(8,128)}', space=vmem, size = 0x2000, scoped, tag = 'scratch operand']
  #allocation3 [shape = 'f32[16,1]{1,0:T(8,128)}', space=vmem, size = 0x2000, scoped, tag = 'scratch operand']
  #allocation4 [shape = 'f32[16,1]{1,0:T(8,128)}', space=vmem, size = 0x2000, scoped, tag = 'scratch operand']
  #allocation5 [shape = 'f32[16,16]{1,0:T(8,128)}', space=vmem, size = 0x2000, scoped, tag = 'scratch operand']
  %s0 = inlined_call_operand.vmem [shape: s32[2,1,256], index: 0, kind: input, shape index: {}]
  %s1 = inlined_call_operand.vmem [shape: s32[16,1], index: 1, kind: input, shape index: {}]
  %s2 = inlined_call_operand.vmem [shape: f32[16,16], index: 2, kind: input, shape index: {}]
  %s3 = inlined_call_operand.hbm [shape: f32[2,16,256], index: 3, kind: input, shape index: {}]
  %s4 = inlined_call_operand.hbm [shape: f32[2,1,2], index: 4, kind: output, shape index: {}]
  %s5 = sld [smem:[#allocation0]]
  $region61: #{tpu_custom_call.1} parent=0
    _
  %s7 = ssub.s32 1, %s5
  %s8 = scalar_select 0, %s7, %s5
  $region1: #{tpu_custom_call.1} parent=0
    #allocation6 [shape = 'u8[32768]{0}', space=vmem, size = 0x8000, scoped, tag = 'input window, operand 3']
    #allocation7 [shape = 's32[2]{0}', space=sflag, size = 0x8, scoped, tag = 'scoped memory for tpu_custom_call.1']
    #allocation8 [shape = 's32[2]{0}', space=sflag, size = 0x8, scoped, tag = 'scoped memory for tpu_custom_call.1']
    #allocation9 [shape = 'u8[1024]{0}', space=vmem, size = 0x400, scoped, tag = 'output window, operand 0']
    %9 = vsyncpa [#allocation7], 0
    %s10 = scalar_lea.sflag [#allocation7], 1
    %11 = vsyncpa %s10, 0
    %12 = vsyncpa [#allocation8], 0
    %s13 = scalar_lea.sflag [#allocation8], 1
    %14 = vsyncpa %s13, 0
    loop: start=0, step=1, limit=4
    $region2: #{tpu_custom_call.1} parent=1 // loop_pre_header
      _
    $region3: #{tpu_custom_call.1} parent=1 // loop_header
      %s16 = sphi 0, %s20
      %p17 = scmp.ge.s32.totalorder %s16, 4
      %s23 = sphi 0, %s35
      %s24 = sphi 0, %s31
      %s25 = sphi 0, %s23
      %s26 = sphi 0, %s24
      %s27 = sphi 0, %s25
      %s28 = sphi 0, %s26
      %s40 = sphi 0, %s42
      %s43 = sphi 0, %s40
      %s44 = sphi 0, %s43
      %s60 = sphi 0, %s44
      %s64 = sphi 0, %s64
      %s66 = sphi 0, %s64
      %s67 = sphi 0, %s66
      %s81 = sphi 0, %s67
      %s85 = sphi 0, %s85
      %s87 = sphi 0, %s85
      %s88 = sphi 0, %s87
      %s102 = sphi 0, %s88
      %s110 = sphi 0, %s112
      %s113 = sphi 0, %s110
      %s114 = sphi 0, %s113
      %s130 = sphi 0, %s114
      %s136 = sphi 0, %s138
      %s139 = sphi 0, %s136
      %s140 = sphi 0, %s139
      %s156 = sphi 0, %s140
    $region4: #{tpu_custom_call.1} parent=1 // loop_header_branch
      %19 = sbr.rel (%p17) target = $region8
    $region5: #{tpu_custom_call.1} parent=1 // loop_body
      %s21 = ssub.s32 %s16, 1
      %s22 = ssub.s32 %s16, 2
      %s29 = sadd.s32 1, %s24
      %p30 = scmp.ge.s32.totalorder %s29, 1
      %s31 = scalar_select %p30, 0, %s29
      %s32 = sadd.s32 1, %s23
      %s33 = scalar_select %p30, %s32, %s23
      %p34 = scmp.ge.s32.totalorder %s33, 2
      %s35 = scalar_select %p34, 0, %s33
      %s36 = ssub.s32 %s23, %s35
      %s37 = ssub.s32 %s24, %s31
      %s38 = sor.u32 %s36, %s37
      %p39 = scmp.eq.s32.totalorder %s38, 0
      %s41 = sadd.s32 %s40, 1
      %s42 = scalar_select %p39, %s40, %s41
      %p45 = pneg %p39
      %p46 = scmp.eq.s32.totalorder %s16, 1
      %p47 = por %p45, %p46
      %p48 = scmp.ne.s32.totalorder %s40, %s43
      %p49 = scmp.eq.s32.totalorder %s16, 0
      %p50 = por %p48, %p49
      %p51 = scmp.ne.s32.totalorder %s40, %s43
      %p52 = scmp.eq.s32.totalorder %s21, 1
      %p53 = por %p51, %p52
      %p54 = scmp.ne.s32.totalorder %s43, %s44
      %p55 = scmp.eq.s32.totalorder %s21, 0
      %p56 = por %p54, %p55
      %p57 = scmp.ne.s32.totalorder %s43, %s44
      %p58 = scmp.eq.s32.totalorder %s22, 1
      %p59 = por %p57, %p58
      %p61 = scmp.ne.s32.totalorder %s44, %s60
      %p62 = scmp.eq.s32.totalorder %s22, 0
      %p63 = por %p61, %p62
      %s65 = sadd.s32 %s64, 1
      %p68 = scmp.eq.s32.totalorder %s16, 1
      %p69 = scmp.ne.s32.totalorder %s64, %s66
      %p70 = scmp.eq.s32.totalorder %s16, 0
      %p71 = por %p69, %p70
      %p72 = scmp.ne.s32.totalorder %s64, %s66
      %p73 = scmp.eq.s32.totalorder %s21, 1
      %p74 = por %p72, %p73
      %p75 = scmp.ne.s32.totalorder %s66, %s67
      %p76 = scmp.eq.s32.totalorder %s21, 0
      %p77 = por %p75, %p76
      %p78 = scmp.ne.s32.totalorder %s66, %s67
      %p79 = scmp.eq.s32.totalorder %s22, 1
      %p80 = por %p78, %p79
      %p82 = scmp.ne.s32.totalorder %s67, %s81
      %p83 = scmp.eq.s32.totalorder %s22, 0
      %p84 = por %p82, %p83
      %s86 = sadd.s32 %s85, 1
      %p89 = scmp.eq.s32.totalorder %s16, 1
      %p90 = scmp.ne.s32.totalorder %s85, %s87
      %p91 = scmp.eq.s32.totalorder %s16, 0
      %p92 = por %p90, %p91
      %p93 = scmp.ne.s32.totalorder %s85, %s87
      %p94 = scmp.eq.s32.totalorder %s21, 1
      %p95 = por %p93, %p94
      %p96 = scmp.ne.s32.totalorder %s87, %s88
      %p97 = scmp.eq.s32.totalorder %s21, 0
      %p98 = por %p96, %p97
      %p99 = scmp.ne.s32.totalorder %s87, %s88
      %p100 = scmp.eq.s32.totalorder %s22, 1
      %p101 = por %p99, %p100
      %p103 = scmp.ne.s32.totalorder %s88, %s102
      %p104 = scmp.eq.s32.totalorder %s22, 0
      %p105 = por %p103, %p104
      %s106 = ssub.s32 %s23, %s35
      %s107 = ssub.s32 %s24, %s31
      %s108 = sor.u32 %s106, %s107
      %p109 = scmp.eq.s32.totalorder %s108, 0
      %s111 = sadd.s32 %s110, 1
      %s112 = scalar_select %p109, %s110, %s111
      %p115 = pneg %p109
      %p116 = scmp.eq.s32.totalorder %s16, 1
      %p117 = por %p115, %p116
      %p118 = scmp.ne.s32.totalorder %s110, %s113
      %p119 = scmp.eq.s32.totalorder %s16, 0
      %p120 = por %p118, %p119
      %p121 = scmp.ne.s32.totalorder %s110, %s113
      %p122 = scmp.eq.s32.totalorder %s21, 1
      %p123 = por %p121, %p122
      %p124 = scmp.ne.s32.totalorder %s113, %s114
      %p125 = scmp.eq.s32.totalorder %s21, 0
      %p126 = por %p124, %p125
      %p127 = scmp.ne.s32.totalorder %s113, %s114
      %p128 = scmp.eq.s32.totalorder %s22, 1
      %p129 = por %p127, %p128
      %p131 = scmp.ne.s32.totalorder %s114, %s130
      %p132 = scmp.eq.s32.totalorder %s22, 0
      %p133 = por %p131, %p132
      %s134 = ssub.s32 %s23, %s35
      %p135 = scmp.eq.s32.totalorder %s134, 0
      %s137 = sadd.s32 %s136, 1
      %s138 = scalar_select %p135, %s136, %s137
      %p141 = pneg %p135
      %p142 = scmp.eq.s32.totalorder %s16, 1
      %p143 = por %p141, %p142
      %p144 = scmp.ne.s32.totalorder %s136, %s139
      %p145 = scmp.eq.s32.totalorder %s16, 0
      %p146 = por %p144, %p145
      %p147 = scmp.ne.s32.totalorder %s136, %s139
      %p148 = scmp.eq.s32.totalorder %s21, 1
      %p149 = por %p147, %p148
      %p150 = scmp.ne.s32.totalorder %s139, %s140
      %p151 = scmp.eq.s32.totalorder %s21, 0
      %p152 = por %p150, %p151
      %p153 = scmp.ne.s32.totalorder %s139, %s140
      %p154 = scmp.eq.s32.totalorder %s22, 1
      %p155 = por %p153, %p154
      %p157 = scmp.ne.s32.totalorder %s140, %s156
      %p158 = scmp.eq.s32.totalorder %s22, 0
      %p159 = por %p157, %p158
      %p160 = scmp.le.s32.totalorder 1, %s16
      %p161 = scmp.lt.s32.totalorder %s16, 3
      %p162 = pnand %p160, %p161
      %p163 = pneg %p162
      // Predicated region
      $region9: #{tpu_custom_call.1} parent=5 // pred_check
        _
      $region10: #{tpu_custom_call.1} parent=5 // pred_check_branch
        %165 = sbr.rel (%p162) target = $region12
      $region11: #{tpu_custom_call.1} parent=5 // pred_region
        %s166 = ssub.s32 %s16, 1
        // Predicated region
        $region13: #{tpu_custom_call.1} parent=11 // pred_check
          %p167 = pneg %p77
        $region14: #{tpu_custom_call.1} parent=11 // pred_check_branch
          %169 = sbr.rel (%p167) target = $region16
        $region15: #{tpu_custom_call.1} parent=11 // pred_region
          _
        $region16: #{tpu_custom_call.1} parent=11 // pred_fallthru
          _
        // Predicated region
        $region17: #{tpu_custom_call.1} parent=11 // pred_check
          %p170 = pneg %p98
        $region18: #{tpu_custom_call.1} parent=11 // pred_check_branch
          %172 = sbr.rel (%p170) target = $region20
        $region19: #{tpu_custom_call.1} parent=11 // pred_region
          _
        $region20: #{tpu_custom_call.1} parent=11 // pred_fallthru
          _
      $region12: #{tpu_custom_call.1} parent=5 // pred_fallthru
        _
      %p173 = scmp.lt.s32.totalorder %s16, 2
      // Predicated region
      $region21: #{tpu_custom_call.1} parent=5 // pred_check
        %p174 = pneg %p173
      $region22: #{tpu_custom_call.1} parent=5 // pred_check_branch
        %176 = sbr.rel (%p174) target = $region24
      $region23: #{tpu_custom_call.1} parent=5 // pred_region
        // Predicated region
        $region25: #{tpu_custom_call.1} parent=23 // pred_check
          %p177 = pneg %p50
        $region26: #{tpu_custom_call.1} parent=23 // pred_check_branch
          %179 = sbr.rel (%p177) target = $region28
        $region27: #{tpu_custom_call.1} parent=23 // pred_region
          %s180 = smul.u32 2, %s24
          %p181 = scmp.lt.s32.totalorder %s23, 1
          %s182 = scalar_select %p181, %s23, 1
          %p183 = scmp.lt.s32.totalorder %s180, 1
          %s184 = scalar_select %p183, %s180, 1
          %s185 = smul.addr %s182, 2
          %s186 = sadd.s32 %s184, %s185
          %s187 = scalar_lea.vmem %s0, %s186
          %s188 = smul.u32 2, %s24
        $region28: #{tpu_custom_call.1} parent=23 // pred_fallthru
          _
        // Predicated region
        $region29: #{tpu_custom_call.1} parent=23 // pred_check
          %p189 = pneg %p120
        $region30: #{tpu_custom_call.1} parent=23 // pred_check_branch
          %191 = sbr.rel (%p189) target = $region32
        $region31: #{tpu_custom_call.1} parent=23 // pred_region
          %s192 = sand.u32 %s110, 1
          %s193 = scalar_lea.sflag [#allocation7], %s192
          %s194 = sand.u32 %s110, 1
          %s195 = smul.addr %s194, 32
          %s196 = scalar_lea.vmem [#allocation6], %s195
          %s197 = smul.u32 2, %s24
          %s199 = ssub.s32 512, 512
          %200 = vsyncadd %s193, %s199
          %s201 = smul.addr %s23, 4
          %s202 = sadd.s32 %s197, %s201
          %s203 = smul.addr %s202, 128
          %s204 = scalar_lea.hbm %s3, %s203
          %s205 = sshll.u32 %s196, 4
          %s206 = int_to_ptr.vmem [resolvable:$true] %s205
          %211 = dma.hbm_to_vmem [thread:$0]  %s204, 512, %s206, %s193, 256, 256, 16
        $region32: #{tpu_custom_call.1} parent=23 // pred_fallthru
          _
      $region24: #{tpu_custom_call.1} parent=5 // pred_fallthru
        _
      %p212 = scmp.le.s32.totalorder 1, %s16
      %p213 = scmp.lt.s32.totalorder %s16, 3
      %p214 = pnand %p212, %p213
      %p215 = pneg %p214
      // Predicated region
      $region33: #{tpu_custom_call.1} parent=5 // pred_check
        _
      $region34: #{tpu_custom_call.1} parent=5 // pred_check_branch
        %217 = sbr.rel (%p214) target = $region36
      $region35: #{tpu_custom_call.1} parent=5 // pred_region
        %s218 = ssub.s32 %s16, 1
        %s219 = sand.u32 %s113, 1
        %s220 = scalar_lea.sflag [#allocation7], %s219
        %s221 = sand.u32 %s113, 1
        %s222 = smul.addr %s221, 32
        %s223 = scalar_lea.vmem [#allocation6], %s222
        // Predicated region
        $region37: #{tpu_custom_call.1} parent=35 // pred_check
          %p224 = pneg %p126
        $region38: #{tpu_custom_call.1} parent=35 // pred_check_branch
          %226 = sbr.rel (%p224) target = $region40
        $region39: #{tpu_custom_call.1} parent=35 // pred_region
          %227 = dma.done %s220, 512
        $region40: #{tpu_custom_call.1} parent=35 // pred_fallthru
          _
        %s228 = smul.u32 2, %s26
        %p229 = scmp.lt.s32.totalorder %s25, 1
        %s230 = scalar_select %p229, %s25, 1
        %p231 = scmp.lt.s32.totalorder %s228, 1
        %s232 = scalar_select %p231, %s228, 1
        %s233 = smul.addr %s230, 2
        %s234 = sadd.s32 %s232, %s233
        %s235 = scalar_lea.vmem %s0, %s234
        %p236 = pneg %p56
        %p237 = pneg %p53
        %p238 = pneg %p77
        %p239 = pneg %p74
        %p240 = pneg %p98
        %p241 = pneg %p95
        %s242 = sand.u32 %s113, 1
        %s243 = scalar_lea.sflag [#allocation7], %s242
        %s244 = sand.u32 %s113, 1
        %s245 = smul.addr %s244, 32
        %s246 = scalar_lea.vmem [#allocation6], %s245
        %p247 = pneg %p126
        %p248 = pneg %p123
        %p249 = pneg %p152
        %p250 = pneg %p149
        %s251 = sand.u32 %s139, 1
        %s252 = scalar_lea.sflag [#allocation8], %s251
        %s253 = sand.u32 %s139, 1
        %s254 = scalar_lea.vmem [#allocation9], %s253
        %s255 = smul.u32 2, %s26
        %p256 = scmp.lt.s32.totalorder %s25, 1
        %s257 = scalar_select %p256, %s25, 1
        %p258 = scmp.lt.s32.totalorder %s255, 1
        %s259 = scalar_select %p258, %s255, 1
        %s260 = smul.addr %s257, 2
        %s261 = sadd.s32 %s259, %s260
        %s262 = scalar_lea.vmem %s0, %s261
        %s263 = smul.u32 2, %s26
        %s264 = smul.u32 2, %s26
        %p266 = scmp.eq.s32.totalorder %s26, 0
        // Predicated region
        $region41: #{tpu_custom_call.1} parent=35 // pred_check
          %p267 = pneg %p266
        $region42: #{tpu_custom_call.1} parent=35 // pred_check_branch
          %269 = sbr.rel (%p267) target = $region44
        $region43: #{tpu_custom_call.1} parent=35 // pred_region
          %vm270 = vcmask 7168
          %271 = vst.msk [vmem:[#allocation2] sm:$0xff] %vm270, -1e+09
          %272 = vst.msk [vmem:[#allocation2 + $0x8] sm:$0xff] %vm270, -1e+09
          %273 = vst.msk [vmem:[#allocation3] sm:$0xff] %vm270, 0.0
          %274 = vst.msk [vmem:[#allocation3 + $0x8] sm:$0xff] %vm270, 0.0
          %275 = vst.msk [vmem:[#allocation4] sm:$0xff] %vm270, 0.0
          %276 = vst.msk [vmem:[#allocation4 + $0x8] sm:$0xff] %vm270, 0.0
          %vm277 = vcmask 130048
          %278 = vst.msk [vmem:[#allocation5] sm:$0xff] %vm277, 0.0
          %279 = vst.msk [vmem:[#allocation5 + $0x8] sm:$0xff] %vm277, 0.0
        $region44: #{tpu_custom_call.1} parent=35 // pred_fallthru
          _
        %v280 = vld [vmem:[%s262] sm:$0x3]
        %v281 = vld [vmem:[%s1] sm:$0xff]
        %v282 = vld [vmem:[%s1 + $0x8] sm:$0xff]
        %v283 = vld [vmem:[%s223] sm:$0xff]
        %v284 = vld [vmem:[%s223 + $0x8] sm:$0xff]
        %v285 = vld [vmem:[%s223 + $0x10] sm:$0xff]
        %v286 = vld [vmem:[%s223 + $0x18] sm:$0xff]
        %v287 = vlaneseq
        %v288 = vshrl.u32 %v287, 7
        %v289 = vsub.s32 0, %v288
        %v290 = vrot.slane %v280, %v289
        %v291 = vlaneseq
        %v292 = vshrl.u32 %v291, 7
        %v293 = vsub.s32 1, %v292
        %v294 = vrot.slane %v280, %v293
        %295 = vset.pattern.permute.xlu0 0
        %296 = vperm.xlu0 %295, %v281
        %v297 = vpop.permute.xlu0 %296
        %298 = vset.pattern.permute.xlu0 0
        %299 = vperm.xlu0 %298, %v282
        %v300 = vpop.permute.xlu0 %299
        %vm301 = vcmp.eq.s32.totalorder %v290, %v297
        %vm302 = vcmp.eq.s32.totalorder %v294, %v297
        %vm303 = vcmp.eq.s32.totalorder %v290, %v300
        %vm304 = vcmp.eq.s32.totalorder %v294, %v300
        %v305 = vsel %vm301, %v283, -1e+09
        %v306 = vsel %vm302, %v284, -1e+09
        %v307 = vsel %vm303, %v285, -1e+09
        %v308 = vsel %vm304, %v286, -1e+09
        %v309 = vmax.f32 %v305, %v306
        %310 = vmax.xlane.f32.xlu0 %v309
        %v311 = vpop.xlane.xlu0 %310
        %v312 = vmax.f32 %v307, %v308
        %313 = vmax.xlane.f32.xlu0 %v312
        %v314 = vpop.xlane.xlu0 %313
        %v315 = vld [vmem:[#allocation2] sm:$0xff]
        %v316 = vld [vmem:[#allocation2 + $0x8] sm:$0xff]
        %v317 = vmax.f32 %v315, %v311
        %v318 = vmax.f32 %v316, %v314
        %v319 = vsub.f32 %v315, %v317
        %v320 = vsub.f32 %v316, %v318
        %v321 = vmul.f32 %v319, 1.442695
        %v322 = vpow.pop %v321
        %v323 = vmul.f32 %v320, 1.442695
        %v324 = vpow.pop %v323
        %v325 = vsub.f32 %v317, %v315
        %v326 = vsub.f32 %v318, %v316
        %327 = vxpose.xlu0.b32.start [1/16] %v325, 128
        %328 = vxpose.xlu0.b32.cont [2/16] %v326, 128
        %329 = vxpose.xlu0.b32.cont [3/16] 0.0, 128
        %330 = vxpose.xlu0.b32.cont [4/16] 0.0, 128
        %331 = vxpose.xlu0.b32.cont [5/16] 0.0, 128
        %332 = vxpose.xlu0.b32.cont [6/16] 0.0, 128
        %333 = vxpose.xlu0.b32.cont [7/16] 0.0, 128
        %334 = vxpose.xlu0.b32.cont [8/16] 0.0, 128
        %335 = vxpose.xlu0.b32.cont [9/16] 0.0, 128
        %336 = vxpose.xlu0.b32.cont [10/16] 0.0, 128
        %337 = vxpose.xlu0.b32.cont [11/16] 0.0, 128
        %338 = vxpose.xlu0.b32.cont [12/16] 0.0, 128
        %339 = vxpose.xlu0.b32.cont [13/16] 0.0, 128
        %340 = vxpose.xlu0.b32.cont [14/16] 0.0, 128
        %341 = vxpose.xlu0.b32.cont [15/16] 0.0, 128
        %342 = vxpose.xlu0.b32.end [16/16] 0.0, 128
        %v343 = vpop.trf.xlu0
        %v344 = vpop.trf.xlu0
        %v345 = vpop.trf.xlu0
        %v346 = vpop.trf.xlu0
        %v347 = vpop.trf.xlu0
        %v348 = vpop.trf.xlu0
        %v349 = vpop.trf.xlu0
        %v350 = vpop.trf.xlu0
        %v351 = vpop.trf.xlu0
        %v352 = vpop.trf.xlu0
        %v353 = vpop.trf.xlu0
        %v354 = vpop.trf.xlu0
        %v355 = vpop.trf.xlu0
        %v356 = vpop.trf.xlu0
        %v357 = vpop.trf.xlu0
        %v358 = vpop.trf.xlu0
        %360 = vset.pattern.permute.xlu0 0
        %361 = vperm.xlu0 %360, %v317
        %v362 = vpop.permute.xlu0 %361
        %365 = vset.pattern.permute.xlu0 0
        %366 = vperm.xlu0 %365, %v318
        %v367 = vpop.permute.xlu0 %366
        %v369 = vsub.f32 %v305, %v362
        %v370 = vsub.f32 %v306, %v362
        %v371 = vsub.f32 %v307, %v367
        %v372 = vsub.f32 %v308, %v367
        %v373 = vmul.f32 %v369, 1.442695
        %v374 = vpow.pop %v373
        %v375 = vmul.f32 %v370, 1.442695
        %v376 = vpow.pop %v375
        %v377 = vmul.f32 %v371, 1.442695
        %v378 = vpow.pop %v377
        %v379 = vmul.f32 %v372, 1.442695
        %v380 = vpow.pop %v379
        %v381 = vld [vmem:[#allocation3] sm:$0xff]
        %v382 = vld [vmem:[#allocation3 + $0x8] sm:$0xff]
        %v383 = vmul.f32 %v322, %v381
        %v384 = vmul.f32 %v324, %v382
        %v385 = vld [vmem:[#allocation5] sm:$0xff]
        %v386 = vld [vmem:[#allocation5 + $0x8] sm:$0xff]
        %388 = vset.pattern.permute.xlu0 0
        %389 = vperm.xlu0 %388, %v322
        %v390 = vpop.permute.xlu0 %389
        %393 = vset.pattern.permute.xlu0 0
        %394 = vperm.xlu0 %393, %v324
        %v395 = vpop.permute.xlu0 %394
        %v397 = vmul.f32 %v390, %v385
        %v398 = vmul.f32 %v395, %v386
        %400 = vset.pattern.permute.xlu0 0
        %401 = vperm.xlu0 %400, %v383
        %v402 = vpop.permute.xlu0 %401
        %405 = vset.pattern.permute.xlu0 0
        %406 = vperm.xlu0 %405, %v384
        %v407 = vpop.permute.xlu0 %406
        %v409 = vlaneseq
        %v410 = vshrl.u32 %v409, 7
        %v411 = vsub.s32 0, %v410
        %v412 = vrot.slane %v343, %v411
        %v413 = vmul.f32 %v402, %v412
        %v414 = vmul.f32 %v407, %v412
        %v415 = vsub.f32 %v397, %v413
        %v416 = vsub.f32 %v398, %v414
        %v417 = vpack.c.bf16 %v378, %v374
        %v418 = vpack.c.bf16 %v380, %v376
        %v419 = vpack.c.bf16 %v371, %v369
        %v420 = vpack.c.bf16 %v372, %v370
        %421 = vmatprep.subr.bf16.mxu0 0
        %422 = vmatpush1.bf16.xpose.msra.mxu0 0
        %423 = vmatprep.subr.bf16.mxu0 0
        %424 = vmatpush1.bf16.xpose.msra.mxu0 0
        %425 = vmatprep.subr.bf16.mxu0 0
        %426 = vmatpush1.bf16.xpose.msra.mxu0 0
        %427 = vmatprep.subr.bf16.mxu0 0
        %428 = vmatpush1.bf16.xpose.msra.mxu0 0
        %429 = vmatprep.subr.bf16.mxu0 0
        %430 = vmatpush1.bf16.xpose.msra.mxu0 0
        %431 = vmatprep.subr.bf16.mxu0 0
        %432 = vmatpush1.bf16.xpose.msra.mxu0 0
        %433 = vmatprep.subr.bf16.mxu0 0
        %434 = vmatpush1.bf16.xpose.msra.mxu0 0
        %435 = vmatprep.subr.bf16.mxu0 %v420
        %436 = vmatpush1.bf16.xpose.msra.mxu0 %v419
        %437 = vmatprep.subr.bf16.mxu0 0
        %438 = vmatpush2.bf16.xpose.msra.mxu0 0
        %439 = vmatprep.subr.bf16.mxu0 0
        %440 = vmatpush2.bf16.xpose.msra.mxu0 0
        %441 = vmatprep.subr.bf16.mxu0 0
        %442 = vmatpush2.bf16.xpose.msra.mxu0 0
        %443 = vmatprep.subr.bf16.mxu0 0
        %444 = vmatpush2.bf16.xpose.msra.mxu0 0
        %445 = vmatprep.subr.bf16.mxu0 0
        %446 = vmatpush2.bf16.xpose.msra.mxu0 0
        %447 = vmatprep.subr.bf16.mxu0 0
        %448 = vmatpush2.bf16.xpose.msra.mxu0 0
        %449 = vmatprep.subr.bf16.mxu0 0
        %450 = vmatpush2.bf16.xpose.msra.mxu0 0
        %451 = vmatprep.subr.bf16.mxu0 0
        %452 = vmatpush2.bf16.xpose.msra.mxu0 0
        %453 = vmatprep.mubr.bf16.mxu0 %v418
        %454 = vmatmul.mubr.bf16.gmra.mxu0 %v417
        %v455 = vpop.f32.mrf.mxu0
        %v456 = vadd.f32 0.0, %v455
        %v457 = vpop.f32.mrf.mxu0
        %v458 = vpop.f32.mrf.mxu0
        %v459 = vadd.f32 0.0, %v458
        %v460 = vpop.f32.mrf.mxu0
        %461 = vdwg.mxu0
        %v462 = vadd.f32 %v415, %v456
        %v463 = vadd.f32 %v416, %v459
        %vm464 = vcmask 130048
        %465 = vst.msk [vmem:[#allocation5] sm:$0xff] %vm464, %v462
        %466 = vst.msk [vmem:[#allocation5 + $0x8] sm:$0xff] %vm464, %v463
        %v467 = vadd.f32 %v374, %v376
        %468 = vadd.xlane.f32.xlu0 %v467
        %v469 = vpop.xlane.xlu0 %468
        %v470 = vadd.f32 %v378, %v380
        %471 = vadd.xlane.f32.xlu0 %v470
        %v472 = vpop.xlane.xlu0 %471
        %v473 = vadd.f32 %v383, %v469
        %v474 = vadd.f32 %v384, %v472
        %vm475 = vcmask 7168
        %476 = vst.msk [vmem:[#allocation3] sm:$0xff] %vm475, %v473
        %477 = vst.msk [vmem:[#allocation3 + $0x8] sm:$0xff] %vm475, %v474
        %v478 = vld [vmem:[#allocation4] sm:$0xff]
        %v479 = vld [vmem:[#allocation4 + $0x8] sm:$0xff]
        %v480 = vsel %vm301, 1, 0
        %v481 = vsel %vm302, 1, 0
        %v482 = vsel %vm303, 1, 0
        %v483 = vsel %vm304, 1, 0
        %v484 = vcvt.s32.f32 %v480
        %v485 = vcvt.s32.f32 %v481
        %v486 = vcvt.s32.f32 %v482
        %v487 = vcvt.s32.f32 %v483
        %v488 = vadd.f32 %v484, %v485
        %489 = vadd.xlane.f32.xlu0 %v488
        %v490 = vpop.xlane.xlu0 %489
        %v491 = vadd.f32 %v486, %v487
        %492 = vadd.xlane.f32.xlu0 %v491
        %v493 = vpop.xlane.xlu0 %492
        %v494 = vadd.f32 %v478, %v490
        %v495 = vadd.f32 %v479, %v493
        %496 = vst.msk [vmem:[#allocation4] sm:$0xff] %vm475, %v494
        %497 = vst.msk [vmem:[#allocation4 + $0x8] sm:$0xff] %vm475, %v495
        %498 = vst.msk [vmem:[#allocation2] sm:$0xff] %vm475, %v317
        %499 = vst.msk [vmem:[#allocation2 + $0x8] sm:$0xff] %vm475, %v318
        // Predicated region
        $region45: #{tpu_custom_call.1} parent=35 // pred_check
          %p500 = pneg %p266
        $region46: #{tpu_custom_call.1} parent=35 // pred_check_branch
          %502 = sbr.rel (%p500) target = $region48
        $region47: #{tpu_custom_call.1} parent=35 // pred_region
          %v503 = vld [vmem:[#allocation5] sm:$0xff]
          %v504 = vld [vmem:[#allocation5 + $0x8] sm:$0xff]
          %v505 = vld [vmem:[#allocation3] sm:$0xff]
          %v506 = vld [vmem:[#allocation3 + $0x8] sm:$0xff]
          %v507 = vrcp.pop %v505
          %v508 = vrcp.pop %v506
          %v509 = vlaneseq
          %v510 = vshrl.u32 %v509, 7
          %v511 = vadd.s32 %v510, 8
          %v512 = vlaneseq
          %v513 = vand.u32 %v512, 127
          %vm514 = vcmp.eq.s32.totalorder %v510, %v513
          %vm515 = vcmp.eq.s32.totalorder %v511, %v513
          %v516 = vsel %vm514, %v503, 0.0
          %v517 = vsel %vm515, %v504, 0.0
          %v518 = vsel %vm464, %v516, 0.0
          %519 = vadd.xlane.f32.xlu0 %v518
          %v520 = vpop.xlane.xlu0 %519
          %v521 = vsel %vm464, %v517, 0.0
          %522 = vadd.xlane.f32.xlu0 %v521
          %v523 = vpop.xlane.xlu0 %522
          %v524 = vsub.f32 %v520, %v503
          %v525 = vsub.f32 %v523, %v504
          %527 = vset.pattern.permute.xlu0 0
          %528 = vperm.xlu0 %527, %v507
          %v529 = vpop.permute.xlu0 %528
          %532 = vset.pattern.permute.xlu0 0
          %533 = vperm.xlu0 %532, %v508
          %v534 = vpop.permute.xlu0 %533
          %v536 = vmul.f32 %v524, %v529
          %v537 = vmul.f32 %v525, %v534
          %538 = vxpose.xlu0.b32.start [1/16] %v536, 128
          %539 = vxpose.xlu0.b32.cont [2/16] %v537, 128
          %540 = vxpose.xlu0.b32.cont [3/16] 0.0, 128
          %541 = vxpose.xlu0.b32.cont [4/16] 0.0, 128
          %542 = vxpose.xlu0.b32.cont [5/16] 0.0, 128
          %543 = vxpose.xlu0.b32.cont [6/16] 0.0, 128
          %544 = vxpose.xlu0.b32.cont [7/16] 0.0, 128
          %545 = vxpose.xlu0.b32.cont [8/16] 0.0, 128
          %546 = vxpose.xlu0.b32.cont [9/16] 0.0, 128
          %547 = vxpose.xlu0.b32.cont [10/16] 0.0, 128
          %548 = vxpose.xlu0.b32.cont [11/16] 0.0, 128
          %549 = vxpose.xlu0.b32.cont [12/16] 0.0, 128
          %550 = vxpose.xlu0.b32.cont [13/16] 0.0, 128
          %551 = vxpose.xlu0.b32.cont [14/16] 0.0, 128
          %552 = vxpose.xlu0.b32.cont [15/16] 0.0, 128
          %553 = vxpose.xlu0.b32.end [16/16] 0.0, 128
          %v554 = vpop.trf.xlu0
          %v555 = vpop.trf.xlu0
          %v556 = vpop.trf.xlu0
          %v557 = vpop.trf.xlu0
          %v558 = vpop.trf.xlu0
          %v559 = vpop.trf.xlu0
          %v560 = vpop.trf.xlu0
          %v561 = vpop.trf.xlu0
          %v562 = vpop.trf.xlu0
          %v563 = vpop.trf.xlu0
          %v564 = vpop.trf.xlu0
          %v565 = vpop.trf.xlu0
          %v566 = vpop.trf.xlu0
          %v567 = vpop.trf.xlu0
          %v568 = vpop.trf.xlu0
          %v569 = vpop.trf.xlu0
          %v570 = vadd.f32 %v536, %v554
          %v571 = vadd.f32 %v537, %v555
          %v572 = vmul.f32 %v570, 0.5
          %v573 = vmul.f32 %v571, 0.5
          %v574 = vld [vmem:[#allocation4] sm:$0xff]
          %v575 = vld [vmem:[#allocation4 + $0x8] sm:$0xff]
          %vm576 = vcmp.ge.f32.partialorder %v574, 2.0
          %vm577 = vcmp.ge.f32.partialorder %v575, 2.0
          %v578 = vsel %vm576, 1, 0
          %v579 = vsel %vm577, 1, 0
          %v580 = vcvt.s32.f32 %v578
          %v581 = vcvt.s32.f32 %v579
          %v582 = vld [vmem:[%s2] sm:$0xff]
          %v583 = vld [vmem:[%s2 + $0x8] sm:$0xff]
          %585 = vset.pattern.permute.xlu0 0
          %586 = vperm.xlu0 %585, %v580
          %v587 = vpop.permute.xlu0 %586
          %590 = vset.pattern.permute.xlu0 0
          %591 = vperm.xlu0 %590, %v581
          %v592 = vpop.permute.xlu0 %591
          %v594 = vmul.f32 %v582, %v587
          %v595 = vmul.f32 %v583, %v592
          %vm596 = vcmp.gt.f32.partialorder %v594, 0.5
          %vm597 = vcmp.gt.f32.partialorder %v595, 0.5
          %v598 = vsub.f32 0.0, %v572
          %v599 = vsub.f32 0.0, %v573
          %v600 = vmul.f32 %v598, 1.442695
          %v601 = vpow.pop %v600
          %v602 = vmul.f32 %v599, 1.442695
          %v603 = vpow.pop %v602
          %v604 = vsel %vm596, %v601, 0.0
          %v605 = vsel %vm597, %v603, 0.0
          %vm606 = vcmp.eq.s32.totalorder %v513, 0
          %v607 = vsel %vm464, %v604, 0.0
          %v608 = vsel %vm464, %v605, 0.0
          %v609 = vadd.f32 %v607, %v608
          %610 = vadd.xlane.f32.xlu0 %v609
          %v611 = vpop.xlane.xlu0 %610
          %v612 = vrot.slane %v611, 4
          %v613 = vadd.f32 %v611, %v612
          %v614 = vrot.slane %v613, 2
          %v615 = vadd.f32 %v613, %v614
          %v616 = vrot.slane %v615, 1
          %v617 = vadd.f32 %v615, %v616
          %s618 = vtos %v617
          %v619 = vsel %vm464, %v594, 0.0
          %v620 = vsel %vm464, %v595, 0.0
          %v621 = vadd.f32 %v619, %v620
          %622 = vadd.xlane.f32.xlu0 %v621
          %v623 = vpop.xlane.xlu0 %622
          %v624 = vrot.slane %v623, 4
          %v625 = vadd.f32 %v623, %v624
          %v626 = vrot.slane %v625, 2
          %v627 = vadd.f32 %v625, %v626
          %v628 = vrot.slane %v627, 1
          %v629 = vadd.f32 %v627, %v628
          %s630 = vtos %v629
          %v631 = vstv %s618
          %v632 = vstv %s630
          %v633 = vsel %vm606, %v631, %v632
          %vm634 = vcmask 8192
          %635 = vst.msk [vmem:[%s254] sm:$0x1] %vm634, %v633
        $region48: #{tpu_custom_call.1} parent=35 // pred_fallthru
          _
        %s636 = sand.u32 %s139, 1
        %s637 = scalar_lea.sflag [#allocation8], %s636
        %s638 = sand.u32 %s139, 1
        %s639 = scalar_lea.vmem [#allocation9], %s638
        // Predicated region
        $region49: #{tpu_custom_call.1} parent=35 // pred_check
          %p640 = pneg %p149
        $region50: #{tpu_custom_call.1} parent=35 // pred_check_branch
          %642 = sbr.rel (%p640) target = $region52
        $region51: #{tpu_custom_call.1} parent=35 // pred_region
          %s644 = ssub.s32 16, 16
          %645 = vsyncadd %s637, %s644
          %s646 = smul.addr %s25, 16
          %s647 = scalar_lea.hbm %s4, %s646
          %s649 = sshll.u32 %s639, 4
          %s650 = int_to_ptr.vmem [resolvable:$true] %s649
          %652 = dma.vmem_to_hbm [thread:$0]  %s650, 16, %s647, %s637
        $region52: #{tpu_custom_call.1} parent=35 // pred_fallthru
          _
      $region36: #{tpu_custom_call.1} parent=5 // pred_fallthru
        _
      %p653 = scmp.le.s32.totalorder 2, %s16
      // Predicated region
      $region53: #{tpu_custom_call.1} parent=5 // pred_check
        %p654 = pneg %p653
      $region54: #{tpu_custom_call.1} parent=5 // pred_check_branch
        %656 = sbr.rel (%p654) target = $region56
      $region55: #{tpu_custom_call.1} parent=5 // pred_region
        %s657 = ssub.s32 %s16, 2
        // Predicated region
        $region57: #{tpu_custom_call.1} parent=55 // pred_check
          %p658 = pneg %p155
        $region58: #{tpu_custom_call.1} parent=55 // pred_check_branch
          %660 = sbr.rel (%p658) target = $region60
        $region59: #{tpu_custom_call.1} parent=55 // pred_region
          %s661 = sand.u32 %s140, 1
          %s662 = scalar_lea.sflag [#allocation8], %s661
          %s663 = sand.u32 %s140, 1
          %s664 = scalar_lea.vmem [#allocation9], %s663
          %665 = dma.done %s662, 16
        $region60: #{tpu_custom_call.1} parent=55 // pred_fallthru
          _
      $region56: #{tpu_custom_call.1} parent=5 // pred_fallthru
        _
    $region6: #{tpu_custom_call.1} parent=1 // loop_footer
      %s20 = sadd.s32 1, %s16
    $region7: #{tpu_custom_call.1} parent=1 // loop_footer_branch
      %15 = sbr.rel target = $region3
    $region8: #{tpu_custom_call.1} parent=1 // loop_exit
      _
    %666 = vsyncpa [#allocation7], 1
    %s667 = scalar_lea.sflag [#allocation7], 1
    %668 = vsyncpa %s667, 1
    %669 = vsyncpa [#allocation8], 1
    %s670 = scalar_lea.sflag [#allocation8], 1
    %671 = vsyncpa %s670, 1

</llo_original>
